<compile_context>
chip_gen: v5e
topology: v5e:2x2
jax: 0.10.0
libtpu: 0.0.40
codegen_flags: <defaults>
</compile_context>

<pallas_src>
import jax
import jax.numpy as jnp
from jax.experimental import pallas as pl
from jax.experimental.pallas import tpu as pltpu


def _round_up(x, m):
    return (x + m - 1) // m * m


def _ffn_kernel(x_ref, w1_ref, b1_ref, w2_ref, b2_ref, o_ref, acc_ref):
    # x_ref : (tm, d_hid)       token tile (compute dtype)
    # w1_ref: (d_hid, tk)       W1^T column tile
    # b1_ref: (1, tk)           f32
    # w2_ref: (tk, d_out)       W2^T row tile
    # b2_ref: (1, d_out)        f32
    # o_ref : (tm, d_out)
    # acc_ref: (tm, d_out) f32  scratch accumulator, resident across k steps
    k = pl.program_id(1)

    @pl.when(k == 0)
    def _():
        acc_ref[...] = jnp.zeros_like(acc_ref)

    h = jnp.dot(x_ref[...], w1_ref[...], preferred_element_type=jnp.float32)
    h = jnp.maximum(h + b1_ref[...], 0.0)                       # ReLU
    acc_ref[...] += jnp.dot(h.astype(w2_ref.dtype), w2_ref[...],
                            preferred_element_type=jnp.float32)

    @pl.when(k == pl.num_programs(1) - 1)
    def _():
        o_ref[...] = (acc_ref[...] + b2_ref[...]).astype(o_ref.dtype)
    # TODO(synk): dropout is identity for p=0 (module default); non-zero p
    # would need pltpu.prng_random_bits-based masking.


def pointwise_feed_forward(x, w1, b1, w2, b2, *, tm=256, tk=512,
                           compute_dtype=None, out_dtype=None):
    """x: (B, L, d_hid) -> (B, L, d_out).

    w1: (d_inner, d_hid), b1: (d_inner,)   -- w_1.weight[..., 0], w_1.bias
    w2: (d_out, d_inner), b2: (d_out,)     -- w_2.weight[..., 0], w_2.bias
    """
    B, L, d_hid = x.shape
    d_inner = w1.shape[0]
    d_out = w2.shape[0]
    M = B * L

    if compute_dtype is None:
        compute_dtype = x.dtype
    if out_dtype is None:
        out_dtype = x.dtype

    # Row (token) tile: clamp to the (padded) token count; keep a multiple of
    # the sublane packing for the compute dtype (16 for bf16, 8 for f32).
    sub = 16 if compute_dtype == jnp.bfloat16 else 8
    tm = max(sub, min(tm, _round_up(M, sub)))
    tm = _round_up(tm, sub)
    M_pad = _round_up(M, tm)

    # Reduction (d_inner) tile: full if it fits, else a multiple of 128 lanes.
    if d_inner <= tk:
        tk_eff = d_inner
        K_pad = d_inner
    else:
        tk_eff = _round_up(tk, 128)
        K_pad = _round_up(d_inner, tk_eff)

    # Tokens-x-features layout, transposed weights, optional bf16 cast for the
    # MXU (biases stay f32 -> added to the f32 accumulation).
    x2d = x.reshape(M, d_hid).astype(compute_dtype)
    if M_pad != M:
        x2d = jnp.pad(x2d, ((0, M_pad - M), (0, 0)))
    w1t = w1.T.astype(compute_dtype)                    # (d_hid, d_inner)
    w2t = w2.T.astype(compute_dtype)                    # (d_inner, d_out)
    b1r = b1.reshape(1, d_inner).astype(jnp.float32)
    b2r = b2.reshape(1, d_out).astype(jnp.float32)
    if K_pad != d_inner:
        w1t = jnp.pad(w1t, ((0, 0), (0, K_pad - d_inner)))
        w2t = jnp.pad(w2t, ((0, K_pad - d_inner), (0, 0)))
        b1r = jnp.pad(b1r, ((0, 0), (0, K_pad - d_inner)))

    grid = (M_pad // tm, K_pad // tk_eff)

    out2d = pl.pallas_call(
        _ffn_kernel,
        out_shape=jax.ShapeDtypeStruct((M_pad, d_out), out_dtype),
        grid_spec=pltpu.PrefetchScalarGridSpec(
            num_scalar_prefetch=0,
            grid=grid,
            in_specs=[
                pl.BlockSpec((tm, d_hid), lambda i, k: (i, 0)),
                pl.BlockSpec((d_hid, tk_eff), lambda i, k: (0, k)),
                pl.BlockSpec((1, tk_eff), lambda i, k: (0, k)),
                pl.BlockSpec((tk_eff, d_out), lambda i, k: (k, 0)),
                pl.BlockSpec((1, d_out), lambda i, k: (0, 0)),
            ],
            out_specs=pl.BlockSpec((tm, d_out), lambda i, k: (i, 0)),
            scratch_shapes=[pltpu.VMEM((tm, d_out), jnp.float32)],
        ),
        compiler_params=pltpu.CompilerParams(
            dimension_semantics=("parallel", "arbitrary"),
            # Headroom above the default scoped limit for large tiles; kept
            # below v7x's 64 MiB physical VMEM (can be raised on v5e/v6e).
            vmem_limit_bytes=48 * 1024 * 1024,
        ),
    )(x2d, w1t, b1r, w2t, b2r)

    return out2d[:M].reshape(B, L, d_out)


def _reference(x, w1, b1, w2, b2):
    # Pure-JAX reference of the PyTorch forward.
    h = jnp.maximum(jnp.einsum("bld,id->bli", x, w1) + b1, 0.0)
    return jnp.einsum("bli,oi->blo", h, w2) + b2


def _make_params(key, d_hid, d_inner, d_out):
    k1, k2, k3, k4 = jax.random.split(key, 4)
    # Deterministic "conv1d" params (kernel size 1 squeezed away).
    bound1 = 1.0 / (d_hid ** 0.5)
    w1 = jax.random.uniform(k1, (d_inner, d_hid), jnp.float32, -bound1, bound1)
    b1 = jax.random.uniform(k2, (d_inner,), jnp.float32, -bound1, bound1)
    bound2 = 1.0 / (d_inner ** 0.5)
    w2 = jax.random.uniform(k3, (d_out, d_inner), jnp.float32, -bound2, bound2)
    b2 = jax.random.uniform(k4, (d_out,), jnp.float32, -bound2, bound2)
    return w1, b1, w2, b2


if __name__ == "__main__":
    key = jax.random.PRNGKey(0)
    k_small, k_large, kp1, kp2 = jax.random.split(key, 4)

    # ---- 1) Small shapes implied by the module (f32, single-tile grid) -----
    B, L, d_hid = 2, 8, 32
    d_inner = d_out = 32       # defaults: d_inner_hid = d_hid, d_out = d_inner
    x = jax.random.normal(k_small, (B, L, d_hid), dtype=jnp.float32)
    w1, b1, w2, b2 = _make_params(kp1, d_hid, d_inner, d_out)

    out = jax.block_until_ready(pointwise_feed_forward(x, w1, b1, w2, b2))
    ref = _reference(x, w1, b1, w2, b2)
    assert out.shape == (B, L, d_out)
    assert jnp.allclose(out, ref, atol=1e-5, rtol=1e-5), "f32 mismatch"

    # ---- 2) Larger ragged shapes, bf16 MXU path, multi-tile (3x2) grid -----
    B2, L2, d_hid2, d_inner2, d_out2 = 4, 90, 128, 256, 128
    x2 = jax.random.normal(k_large, (B2, L2, d_hid2), dtype=jnp.float32)
    w1b, b1b, w2b, b2b = _make_params(kp2, d_hid2, d_inner2, d_out2)

    out2 = jax.block_until_ready(
        pointwise_feed_forward(x2, w1b, b1b, w2b, b2b, tm=128, tk=128,
                               compute_dtype=jnp.bfloat16,
                               out_dtype=jnp.float32))
    # Reference on the same bf16-rounded inputs (kernel accumulates in f32).
    ref2 = _reference(x2.astype(jnp.bfloat16).astype(jnp.float32),
                      w1b.astype(jnp.bfloat16).astype(jnp.float32), b1b,
                      w2b.astype(jnp.bfloat16).astype(jnp.float32), b2b)
    assert out2.shape == (B2, L2, d_out2)
    assert jnp.allclose(out2, ref2, atol=1e-1, rtol=1e-1), "bf16 mismatch"

    print("KERNEL_OK")
</pallas_src>

<mosaic_0001>
module attributes {stable_mosaic.version = 11 : i64} {
  func.func @_ffn_kernel(%arg0: i32, %arg1: i32, %arg2: memref<16x32xf32, #tpu.memory_space<vmem>>, %arg3: memref<32x32xf32, #tpu.memory_space<vmem>>, %arg4: memref<1x32xf32, #tpu.memory_space<vmem>>, %arg5: memref<32x32xf32, #tpu.memory_space<vmem>>, %arg6: memref<1x32xf32, #tpu.memory_space<vmem>>, %arg7: memref<16x32xf32, #tpu.memory_space<vmem>>, %arg8: memref<16x32xf32, #tpu.memory_space<vmem>>) attributes {dimension_semantics = [#tpu.dimension_semantics<parallel>, #tpu.dimension_semantics<arbitrary>], iteration_bounds = array<i64: 1, 1>, scalar_prefetch = 0 : i64, scratch_operands = 1 : i64, tpu.core_type = #tpu.core_type<tc>, window_params = [{transform_indices = @transform_0, window_bounds = array<i64: 16, 32>}, {transform_indices = @transform_1, window_bounds = array<i64: 32, 32>}, {transform_indices = @transform_2, window_bounds = array<i64: 1, 32>}, {transform_indices = @transform_3, window_bounds = array<i64: 32, 32>}, {pipeline_mode = #tpu.pipeline_mode<synchronous>, transform_indices = @transform_4, window_bounds = array<i64: 1, 32>}, {transform_indices = @transform_5, window_bounds = array<i64: 16, 32>}]} {
    %c0_i32 = arith.constant 0 : i32
    %0 = arith.cmpi eq, %arg1, %c0_i32 : i32
    %1 = arith.extui %0 : i1 to i32
    %c0_i32_0 = arith.constant 0 : i32
    %2 = arith.cmpi ne, %1, %c0_i32_0 : i32
    scf.if %2 {
      %cst_16 = arith.constant 0.000000e+00 : f32
      %19 = vector.broadcast %cst_16 : f32 to vector<16x32xf32>
      %c0_17 = arith.constant 0 : index
      %c0_18 = arith.constant 0 : index
      %20 = vector.load %arg8[%c0_17, %c0_18] : memref<16x32xf32, #tpu.memory_space<vmem>>, vector<16x32xf32>
      tpu.vector_store %arg8[%c0_17, %c0_18], %19 {strides = array<i32>} : memref<16x32xf32, #tpu.memory_space<vmem>>, vector<16x32xf32>,
    } else {
    }
    %c0 = arith.constant 0 : index
    %c0_1 = arith.constant 0 : index
    %3 = vector.load %arg2[%c0, %c0_1] : memref<16x32xf32, #tpu.memory_space<vmem>>, vector<16x32xf32>
    %c0_2 = arith.constant 0 : index
    %c0_3 = arith.constant 0 : index
    %4 = vector.load %arg3[%c0_2, %c0_3] : memref<32x32xf32, #tpu.memory_space<vmem>>, vector<32x32xf32>
    %cst = arith.constant dense<0.000000e+00> : vector<16x32xf32>
    %5 = tpu.matmul %3, %4, %cst {dimension_numbers = #tpu.dot_dimension_numbers<[1], [0], [0], [1], [0, 0, 1, 1], [], []>} : vector<16x32xf32>, vector<32x32xf32>, vector<16x32xf32> -> vector<16x32xf32>
    %c0_4 = arith.constant 0 : index
    %c0_5 = arith.constant 0 : index
    %6 = vector.load %arg4[%c0_4, %c0_5] : memref<1x32xf32, #tpu.memory_space<vmem>>, vector<1x32xf32>
    %7 = vector.broadcast %6 : vector<1x32xf32> to vector<16x32xf32>
    %8 = arith.addf %5, %7 : vector<16x32xf32>
    %cst_6 = arith.constant 0.000000e+00 : f32
    %9 = vector.broadcast %cst_6 : f32 to vector<16x32xf32>
    %10 = arith.maximumf %8, %9 : vector<16x32xf32>
    %c0_7 = arith.constant 0 : index
    %c0_8 = arith.constant 0 : index
    %11 = vector.load %arg8[%c0_7, %c0_8] : memref<16x32xf32, #tpu.memory_space<vmem>>, vector<16x32xf32>
    %c0_9 = arith.constant 0 : index
    %c0_10 = arith.constant 0 : index
    %12 = vector.load %arg5[%c0_9, %c0_10] : memref<32x32xf32, #tpu.memory_space<vmem>>, vector<32x32xf32>
    %cst_11 = arith.constant dense<0.000000e+00> : vector<16x32xf32>
    %13 = tpu.matmul %10, %12, %cst_11 {dimension_numbers = #tpu.dot_dimension_numbers<[1], [0], [0], [1], [0, 0, 1, 1], [], []>} : vector<16x32xf32>, vector<32x32xf32>, vector<16x32xf32> -> vector<16x32xf32>
    %14 = arith.addf %11, %13 : vector<16x32xf32>
    %c0_12 = arith.constant 0 : index
    %c0_13 = arith.constant 0 : index
    %15 = vector.load %arg8[%c0_12, %c0_13] : memref<16x32xf32, #tpu.memory_space<vmem>>, vector<16x32xf32>
    tpu.vector_store %arg8[%c0_12, %c0_13], %14 {strides = array<i32>} : memref<16x32xf32, #tpu.memory_space<vmem>>, vector<16x32xf32>,
    %c0_i32_14 = arith.constant 0 : i32
    %16 = arith.cmpi eq, %arg1, %c0_i32_14 : i32
    %17 = arith.extui %16 : i1 to i32
    %c0_i32_15 = arith.constant 0 : i32
    %18 = arith.cmpi ne, %17, %c0_i32_15 : i32
    scf.if %18 {
      %c0_16 = arith.constant 0 : index
      %c0_17 = arith.constant 0 : index
      %19 = vector.load %arg8[%c0_16, %c0_17] : memref<16x32xf32, #tpu.memory_space<vmem>>, vector<16x32xf32>
      %c0_18 = arith.constant 0 : index
      %c0_19 = arith.constant 0 : index
      %20 = vector.load %arg6[%c0_18, %c0_19] : memref<1x32xf32, #tpu.memory_space<vmem>>, vector<1x32xf32>
      %21 = vector.broadcast %20 : vector<1x32xf32> to vector<16x32xf32>
      %22 = arith.addf %19, %21 : vector<16x32xf32>
      %c0_20 = arith.constant 0 : index
      %c0_21 = arith.constant 0 : index
      %23 = vector.load %arg7[%c0_20, %c0_21] : memref<16x32xf32, #tpu.memory_space<vmem>>, vector<16x32xf32>
      tpu.vector_store %arg7[%c0_20, %c0_21], %22 {strides = array<i32>} : memref<16x32xf32, #tpu.memory_space<vmem>>, vector<16x32xf32>,
    } else {
    }
    return
  }
  func.func @transform_0(%arg0: i32, %arg1: i32) -> (i32, i32) {
    %c0_i32 = arith.constant 0 : i32
    %c0_i32_0 = arith.constant 0 : i32
    return %arg0, %c0_i32 : i32, i32
  }
  func.func @transform_1(%arg0: i32, %arg1: i32) -> (i32, i32) {
    %c0_i32 = arith.constant 0 : i32
    %c0_i32_0 = arith.constant 0 : i32
    return %c0_i32, %arg1 : i32, i32
  }
  func.func @transform_2(%arg0: i32, %arg1: i32) -> (i32, i32) {
    %c0_i32 = arith.constant 0 : i32
    %c0_i32_0 = arith.constant 0 : i32
    return %c0_i32, %arg1 : i32, i32
  }
  func.func @transform_3(%arg0: i32, %arg1: i32) -> (i32, i32) {
    %c0_i32 = arith.constant 0 : i32
    %c0_i32_0 = arith.constant 0 : i32
    return %arg1, %c0_i32 : i32, i32
  }
  func.func @transform_4(%arg0: i32, %arg1: i32) -> (i32, i32) {
    %c0_i32 = arith.constant 0 : i32
    %c0_i32_0 = arith.constant 0 : i32
    %c0_i32_1 = arith.constant 0 : i32
    return %c0_i32, %c0_i32_0 : i32, i32
  }
  func.func @transform_5(%arg0: i32, %arg1: i32) -> (i32, i32) {
    %c0_i32 = arith.constant 0 : i32
    %c0_i32_0 = arith.constant 0 : i32
    return %arg0, %c0_i32 : i32, i32
  }
}

</mosaic_0001>

<llo_original>
// kernel: tpu_custom_call.1
$region0: #{tpu_custom_call.1}
  #allocation0 [shape = 'u32[]', space=smem, size = 0x4, offset = 0x4, fixed_abs, tag = 'smem constant byte address 0x4 - core index']
  #allocation1 [shape = 'u32[72,128]{1,0:T(1,128)}', space=vmem, size = 0x9000, scoped, tag = 'internal scratch']
  #allocation2 [shape = 'f32[16,32]{1,0:T(8,128)}', space=vmem, size = 0x2000, scoped, tag = 'scratch operand']
  %s0 = inlined_call_operand.hbm [shape: f32[16,32], index: 0, kind: input, shape index: {}]
  %s1 = inlined_call_operand.hbm [shape: f32[32,32], index: 1, kind: input, shape index: {}]
  %s2 = inlined_call_operand.vmem [shape: f32[1,32], index: 2, kind: input, shape index: {}]
  %s3 = inlined_call_operand.hbm [shape: f32[32,32], index: 3, kind: input, shape index: {}]
  %s4 = inlined_call_operand.vmem [shape: f32[1,32], index: 4, kind: input, shape index: {}]
  %s5 = inlined_call_operand.hbm [shape: f32[16,32], index: 5, kind: output, shape index: {}]
  %s6 = sld [smem:[#allocation0]]
  $region50: #{tpu_custom_call.1} parent=0
    _
  %s8 = ssub.s32 1, %s6
  %s9 = scalar_select 0, %s8, %s6
  $region1: #{tpu_custom_call.1} parent=0
    #allocation3 [shape = 'u8[8192]{0}', space=vmem, size = 0x2000, scoped, tag = 'input window, operand 0, single buffered']
    #allocation4 [shape = 's32[1]{0}', space=sflag, size = 0x4, scoped, tag = 'scoped memory for tpu_custom_call.1']
    #allocation5 [shape = 's32[1]{0}', space=sflag, size = 0x4, scoped, tag = 'scoped memory for tpu_custom_call.1']
    #allocation6 [shape = 'u8[16384]{0}', space=vmem, size = 0x4000, scoped, tag = 'input window, operand 1, single buffered']
    #allocation7 [shape = 's32[1]{0}', space=sflag, size = 0x4, scoped, tag = 'scoped memory for tpu_custom_call.1']
    #allocation8 [shape = 'u8[16384]{0}', space=vmem, size = 0x4000, scoped, tag = 'input window, operand 3, single buffered']
    #allocation9 [shape = 'u8[8192]{0}', space=vmem, size = 0x2000, scoped, tag = 'output window, operand 0, single buffered']
    %10 = vsyncpa [#allocation4], 0
    %11 = vsyncpa [#allocation7], 0
    %12 = vsyncpa [#allocation5], 0
    // Predicated region
    $region2: #{tpu_custom_call.1} parent=1 // pred_check
      _
    $region3: #{tpu_custom_call.1} parent=1 // pred_check_branch
      %14 = sbr.rel (0) target = $region5
    $region4: #{tpu_custom_call.1} parent=1 // pred_region
      %16 = vsyncadd [#allocation4], 0
      %s17 = sshll.u32 %s0, 4
      %s18 = int_to_ptr.hbm [resolvable:$true] %s17
      %s19 = sshll.u32 [#allocation3], 4
      %s20 = int_to_ptr.vmem [resolvable:$true] %s19
      %25 = dma.hbm_to_vmem [thread:$0]  %s18, 256, %s20, [#allocation4], 128, 128, 8
    $region5: #{tpu_custom_call.1} parent=1 // pred_fallthru
      _
    // Predicated region
    $region6: #{tpu_custom_call.1} parent=1 // pred_check
      _
    $region7: #{tpu_custom_call.1} parent=1 // pred_check_branch
      %27 = sbr.rel (0) target = $region9
    $region8: #{tpu_custom_call.1} parent=1 // pred_region
      %29 = vsyncadd [#allocation7], 0
      %s30 = sshll.u32 %s1, 4
      %s31 = int_to_ptr.hbm [resolvable:$true] %s30
      %s32 = sshll.u32 [#allocation6], 4
      %s33 = int_to_ptr.vmem [resolvable:$true] %s32
      %38 = dma.hbm_to_vmem [thread:$0]  %s31, 512, %s33, [#allocation7], 128, 128, 8
    $region9: #{tpu_custom_call.1} parent=1 // pred_fallthru
      _
    // Predicated region
    $region10: #{tpu_custom_call.1} parent=1 // pred_check
      _
    $region11: #{tpu_custom_call.1} parent=1 // pred_check_branch
      %40 = sbr.rel (0) target = $region13
    $region12: #{tpu_custom_call.1} parent=1 // pred_region
      _
    $region13: #{tpu_custom_call.1} parent=1 // pred_fallthru
      _
    // Predicated region
    $region14: #{tpu_custom_call.1} parent=1 // pred_check
      _
    $region15: #{tpu_custom_call.1} parent=1 // pred_check_branch
      %42 = sbr.rel (0) target = $region17
    $region16: #{tpu_custom_call.1} parent=1 // pred_region
      %44 = vsyncadd [#allocation7], 0
      %s45 = sshll.u32 %s3, 4
      %s46 = int_to_ptr.hbm [resolvable:$true] %s45
      %s47 = sshll.u32 [#allocation8], 4
      %s48 = int_to_ptr.vmem [resolvable:$true] %s47
      %53 = dma.hbm_to_vmem [thread:$0]  %s46, 512, %s48, [#allocation7], 128, 128, 8
    $region17: #{tpu_custom_call.1} parent=1 // pred_fallthru
      _
    // Predicated region
    $region18: #{tpu_custom_call.1} parent=1 // pred_check
      _
    $region19: #{tpu_custom_call.1} parent=1 // pred_check_branch
      %55 = sbr.rel (0) target = $region21
    $region20: #{tpu_custom_call.1} parent=1 // pred_region
      _
    $region21: #{tpu_custom_call.1} parent=1 // pred_fallthru
      _
    // Predicated region
    $region22: #{tpu_custom_call.1} parent=1 // pred_check
      _
    $region23: #{tpu_custom_call.1} parent=1 // pred_check_branch
      %57 = sbr.rel (0) target = $region25
    $region24: #{tpu_custom_call.1} parent=1 // pred_region
      %59 = dma.done [#allocation4], 256
    $region25: #{tpu_custom_call.1} parent=1 // pred_fallthru
      _
    // Predicated region
    $region26: #{tpu_custom_call.1} parent=1 // pred_check
      _
    $region27: #{tpu_custom_call.1} parent=1 // pred_check_branch
      %61 = sbr.rel (0) target = $region29
    $region28: #{tpu_custom_call.1} parent=1 // pred_region
      %63 = dma.done [#allocation7], 512
    $region29: #{tpu_custom_call.1} parent=1 // pred_fallthru
      _
    // Predicated region
    $region30: #{tpu_custom_call.1} parent=1 // pred_check
      _
    $region31: #{tpu_custom_call.1} parent=1 // pred_check_branch
      %65 = sbr.rel (0) target = $region33
    $region32: #{tpu_custom_call.1} parent=1 // pred_region
      %67 = dma.done [#allocation7], 512
    $region33: #{tpu_custom_call.1} parent=1 // pred_fallthru
      _
    %p68 = scmp.eq.s32.totalorder 0, 0
    // Predicated region
    $region34: #{tpu_custom_call.1} parent=1 // pred_check
      %p69 = pneg %p68
    $region35: #{tpu_custom_call.1} parent=1 // pred_check_branch
      %71 = sbr.rel (%p69) target = $region37
    $region36: #{tpu_custom_call.1} parent=1 // pred_region
      %vm72 = vcmask 261120
      %73 = vst.msk [vmem:[#allocation2] sm:$0xff] %vm72, 0.0
      %74 = vst.msk [vmem:[#allocation2 + $0x8] sm:$0xff] %vm72, 0.0
    $region37: #{tpu_custom_call.1} parent=1 // pred_fallthru
      _
    %v75 = vld [vmem:[#allocation3] sm:$0xff]
    %v76 = vld [vmem:[#allocation3 + $0x8] sm:$0xff]
    %v77 = vld [vmem:[#allocation6] sm:$0xff]
    %v78 = vld [vmem:[#allocation6 + $0x8] sm:$0xff]
    %v79 = vld [vmem:[#allocation6 + $0x10] sm:$0xff]
    %v80 = vld [vmem:[#allocation6 + $0x18] sm:$0xff]
    %v81 = vld [vmem:[%s2] sm:$0x1]
    %v83 = vperm.slane %v81, 0
    %vm85 = vcmask 261120
    %v87 = vsel %vm85, %v75, 0
    %v90 = vsel %vm85, %v76, 0
    %92 = vmatpush.msra.mxu0 0.0
    %93 = vmatpush.msra.mxu0 0.0
    %94 = vmatpush.msra.mxu0 0.0
    %95 = vmatpush.msra.mxu0 0.0
    %96 = vmatpush.msra.mxu0 0.0
    %97 = vmatpush.msra.mxu0 0.0
    %98 = vmatpush.msra.mxu0 0.0
    %99 = vmatpush.msra.mxu0 0.0
    %100 = vmatpush.msra.mxu0 0.0
    %101 = vmatpush.msra.mxu0 0.0
    %102 = vmatpush.msra.mxu0 0.0
    %103 = vmatpush.msra.mxu0 0.0
    %104 = vmatpush.msra.mxu0 %v80
    %105 = vmatpush.msra.mxu0 %v79
    %106 = vmatpush.msra.mxu0 %v78
    %107 = vmatpush.msra.mxu0 %v77
    %108 = vmatmul.f32.gmra.mxu0 %v87
    %v109 = vpop.f32.mrf.mxu0
    %v110 = vadd.f32 %v83, %v109
    %111 = vmatmul.f32.gmra.mxu0 %v90
    %v112 = vpop.f32.mrf.mxu0
    %v113 = vadd.f32 %v83, %v112
    %114 = vdwg.mxu0
    %v115 = vmax.f32 %v110, 0.0
    %v116 = vmax.f32 %v113, 0.0
    %v117 = vld [vmem:[#allocation2] sm:$0xff]
    %v118 = vld [vmem:[#allocation2 + $0x8] sm:$0xff]
    %v119 = vld [vmem:[#allocation8] sm:$0xff]
    %v120 = vld [vmem:[#allocation8 + $0x8] sm:$0xff]
    %v121 = vld [vmem:[#allocation8 + $0x10] sm:$0xff]
    %v122 = vld [vmem:[#allocation8 + $0x18] sm:$0xff]
    %v124 = vsel %vm85, %v115, 0
    %v127 = vsel %vm85, %v116, 0
    %129 = vmatpush.msra.mxu0 0.0
    %130 = vmatpush.msra.mxu0 0.0
    %131 = vmatpush.msra.mxu0 0.0
    %132 = vmatpush.msra.mxu0 0.0
    %133 = vmatpush.msra.mxu0 0.0
    %134 = vmatpush.msra.mxu0 0.0
    %135 = vmatpush.msra.mxu0 0.0
    %136 = vmatpush.msra.mxu0 0.0
    %137 = vmatpush.msra.mxu0 0.0
    %138 = vmatpush.msra.mxu0 0.0
    %139 = vmatpush.msra.mxu0 0.0
    %140 = vmatpush.msra.mxu0 0.0
    %141 = vmatpush.msra.mxu0 %v122
    %142 = vmatpush.msra.mxu0 %v121
    %143 = vmatpush.msra.mxu0 %v120
    %144 = vmatpush.msra.mxu0 %v119
    %145 = vmatmul.f32.gmra.mxu0 %v124
    %v146 = vpop.f32.mrf.mxu0
    %v147 = vadd.f32 0.0, %v146
    %148 = vmatmul.f32.gmra.mxu0 %v127
    %v149 = vpop.f32.mrf.mxu0
    %v150 = vadd.f32 0.0, %v149
    %151 = vdwg.mxu0
    %v152 = vadd.f32 %v117, %v147
    %v153 = vadd.f32 %v118, %v150
    %154 = vst.msk [vmem:[#allocation2] sm:$0xff] %vm85, %v152
    %155 = vst.msk [vmem:[#allocation2 + $0x8] sm:$0xff] %vm85, %v153
    // Predicated region
    $region38: #{tpu_custom_call.1} parent=1 // pred_check
      %p156 = pneg %p68
    $region39: #{tpu_custom_call.1} parent=1 // pred_check_branch
      %158 = sbr.rel (%p156) target = $region41
    $region40: #{tpu_custom_call.1} parent=1 // pred_region
      %v159 = vld [vmem:[#allocation2] sm:$0xff]
      %v160 = vld [vmem:[#allocation2 + $0x8] sm:$0xff]
      %v161 = vld [vmem:[%s4] sm:$0x1]
      %v163 = vperm.slane %v161, 0
      %v165 = vadd.f32 %v159, %v163
      %v166 = vadd.f32 %v160, %v163
      %167 = vst.msk [vmem:[#allocation9] sm:$0xff] %vm85, %v165
      %168 = vst.msk [vmem:[#allocation9 + $0x8] sm:$0xff] %vm85, %v166
    $region41: #{tpu_custom_call.1} parent=1 // pred_fallthru
      _
    // Predicated region
    $region42: #{tpu_custom_call.1} parent=1 // pred_check
      _
    $region43: #{tpu_custom_call.1} parent=1 // pred_check_branch
      %170 = sbr.rel (0) target = $region45
    $region44: #{tpu_custom_call.1} parent=1 // pred_region
      %172 = vsyncadd [#allocation5], 0
      %s173 = sshll.u32 [#allocation9], 4
      %s174 = int_to_ptr.vmem [resolvable:$true] %s173
      %s175 = sshll.u32 %s5, 4
      %s176 = int_to_ptr.hbm [resolvable:$true] %s175
      %181 = dma.vmem_to_hbm [thread:$0]  %s174, 256, %s176, [#allocation5], 128, 128, 8
    $region45: #{tpu_custom_call.1} parent=1 // pred_fallthru
      _
    // Predicated region
    $region46: #{tpu_custom_call.1} parent=1 // pred_check
      _
    $region47: #{tpu_custom_call.1} parent=1 // pred_check_branch
      %183 = sbr.rel (0) target = $region49
    $region48: #{tpu_custom_call.1} parent=1 // pred_region
      %185 = dma.done [#allocation5], 256
    $region49: #{tpu_custom_call.1} parent=1 // pred_fallthru
      _
    %186 = vsyncpa [#allocation4], 1
    %187 = vsyncpa [#allocation7], 1
    %188 = vsyncpa [#allocation5], 1

</llo_original>
